<compile_context>
chip_gen: v7x
topology: tpu7x:2x2x1
jax: 0.10.0
libtpu: 0.0.40
codegen_flags: <defaults>
</compile_context>

<pallas_src>
import jax
import jax.numpy as jnp
from jax.experimental import pallas as pl
from jax.experimental.pallas import tpu as pltpu

IN_CHANNELS = 1
OUT_CHANNELS = 1
KERNEL_SIZE = 3
_LANES = 128


def _conv_relu_kernel(w_ref, x_ref, o_ref):
    """9-tap MAC + ReLU on a lane-dense 2-D slab.

    w_ref: (9,) f32 in SMEM       -- 3x3 taps, row-major.
    x_ref: (R+2, WP) f32 in VMEM  -- N images stacked on rows (R = N*H) plus a
                                     2-row zero halo; lanes zero-padded to WP
                                     (multiple of 128).
    o_ref: (R, WP) f32 in VMEM    -- lane-dense output; wrapper keeps the valid
                                     (OH, OW) window per image.
    """
    rows_out = o_ref.shape[0]
    wp = x_ref.shape[1]

    # Hoist all nine scalar taps off the vector critical path.
    w = [w_ref[k] for k in range(KERNEL_SIZE * KERNEL_SIZE)]

    x = x_ref[...]

    acc = None
    for di in range(KERNEL_SIZE):
        # Row shift by di: one static sublane-offset slice per di.
        x_di = x[di:di + rows_out, :]
        for dj in range(KERNEL_SIZE):
            # Lane shift by dj via XLU rotate on the already-sliced view
            # (wrap-around columns land in padding the wrapper discards).
            tap = x_di if dj == 0 else pltpu.roll(x_di, wp - dj, axis=1)
            contrib = w[di * KERNEL_SIZE + dj] * tap
            # Tap (0, 0) initializes the accumulator directly.
            acc = contrib if acc is None else acc + contrib

    o_ref[...] = jnp.maximum(acc, 0.0)


def conv_relu(x_nchw, weight):
    """x_nchw: (N, 1, H, W) float32; weight: (1, 1, 3, 3) float32."""
    n, c, h, w = x_nchw.shape
    assert c == IN_CHANNELS == 1
    oh, ow = h - KERNEL_SIZE + 1, w - KERNEL_SIZE + 1
    halo = KERNEL_SIZE - 1

    # Wrapper-side layout plumbing: fold N into rows, pad columns to 128 and
    # rows by the kernel halo (this single pad also replaces the old
    # post-kernel output pad).
    wp = max(_LANES, -(-w // _LANES) * _LANES)
    rows = n * h
    x2 = x_nchw.astype(jnp.float32).reshape(rows, w)
    x2 = jnp.pad(x2, ((0, halo), (0, wp - w)))
    w_taps = weight.astype(jnp.float32).reshape(-1)          # (9,) scalar taps

    out2 = pl.pallas_call(
        _conv_relu_kernel,
        out_shape=jax.ShapeDtypeStruct((rows, wp), jnp.float32),
        in_specs=[
            pl.BlockSpec(memory_space=pltpu.MemorySpace.SMEM),   # 3x3 taps
            pl.BlockSpec(memory_space=pltpu.MemorySpace.VMEM),   # packed input
        ],
        out_specs=pl.BlockSpec(memory_space=pltpu.MemorySpace.VMEM),
    )(w_taps, x2)

    # Undo the packing: per-image rows >= OH (image-straddle / zero-halo rows)
    # and zero-padded columns are invalid; keep the valid (OH, OW) window.
    out = out2.reshape(n, h, wp)[:, :oh, :ow]
    return out.reshape(n, OUT_CHANNELS, oh, ow).astype(x_nchw.dtype)


def _reference(x_nchw, weight):
    return jnp.maximum(
        jax.lax.conv_general_dilated(
            x_nchw, weight, window_strides=(1, 1), padding="VALID",
            dimension_numbers=("NCHW", "OIHW", "NCHW")),
        0.0)


if __name__ == "__main__":
    key = jax.random.PRNGKey(0)
    kx, kw = jax.random.split(key)

    # Small shapes consistent with the module: N=2, C=1, H=W=16.
    x = jax.random.normal(kx, (2, IN_CHANNELS, 16, 16), dtype=jnp.float32)
    # Deterministic synthetic weight (module uses Conv2d default init; no checkpoint).
    weight = jax.random.normal(
        kw, (OUT_CHANNELS, IN_CHANNELS, KERNEL_SIZE, KERNEL_SIZE),
        dtype=jnp.float32) * 0.1

    y = conv_relu(x, weight)
    jax.block_until_ready(y)

    y_ref = _reference(x, weight)
    assert y.shape == (2, 1, 14, 14)
    assert jnp.allclose(y, y_ref, atol=1e-5, rtol=1e-5)

    print("KERNEL_OK")
</pallas_src>

<mosaic_0001>
module attributes {stable_mosaic.version = 11 : i64} {
  func.func @_conv_relu_kernel(%arg0: memref<9xf32, #tpu.memory_space<smem>>, %arg1: memref<34x128xf32, #tpu.memory_space<vmem>>, %arg2: memref<32x128xf32, #tpu.memory_space<vmem>>) attributes {dimension_semantics = [], scalar_prefetch = 0 : i64, scratch_operands = 0 : i64, tpu.core_type = #tpu.core_type<tc>} {
    %c0 = arith.constant 0 : index
    %0 = memref.load %arg0[%c0] : memref<9xf32, #tpu.memory_space<smem>>
    %c1 = arith.constant 1 : index
    %1 = memref.load %arg0[%c1] : memref<9xf32, #tpu.memory_space<smem>>
    %c2 = arith.constant 2 : index
    %2 = memref.load %arg0[%c2] : memref<9xf32, #tpu.memory_space<smem>>
    %c3 = arith.constant 3 : index
    %3 = memref.load %arg0[%c3] : memref<9xf32, #tpu.memory_space<smem>>
    %c4 = arith.constant 4 : index
    %4 = memref.load %arg0[%c4] : memref<9xf32, #tpu.memory_space<smem>>
    %c5 = arith.constant 5 : index
    %5 = memref.load %arg0[%c5] : memref<9xf32, #tpu.memory_space<smem>>
    %c6 = arith.constant 6 : index
    %6 = memref.load %arg0[%c6] : memref<9xf32, #tpu.memory_space<smem>>
    %c7 = arith.constant 7 : index
    %7 = memref.load %arg0[%c7] : memref<9xf32, #tpu.memory_space<smem>>
    %c8 = arith.constant 8 : index
    %8 = memref.load %arg0[%c8] : memref<9xf32, #tpu.memory_space<smem>>
    %c0_0 = arith.constant 0 : index
    %c0_1 = arith.constant 0 : index
    %9 = vector.load %arg1[%c0_0, %c0_1] : memref<34x128xf32, #tpu.memory_space<vmem>>, vector<34x128xf32>
    %10 = vector.extract_strided_slice %9 {offsets = [0, 0], sizes = [32, 128], strides = [1, 1]} : vector<34x128xf32> to vector<32x128xf32>
    %11 = vector.broadcast %0 : f32 to vector<32x128xf32>
    %12 = arith.mulf %11, %10 : vector<32x128xf32>
    %c127_i32 = arith.constant 127 : i32
    %13 = tpu.dynamic_rotate %10 by %c127_i32 dim 1 : vector<32x128xf32>, i32 -> vector<32x128xf32>
    %14 = vector.broadcast %1 : f32 to vector<32x128xf32>
    %15 = arith.mulf %14, %13 : vector<32x128xf32>
    %16 = arith.addf %12, %15 : vector<32x128xf32>
    %c126_i32 = arith.constant 126 : i32
    %17 = tpu.dynamic_rotate %10 by %c126_i32 dim 1 : vector<32x128xf32>, i32 -> vector<32x128xf32>
    %18 = vector.broadcast %2 : f32 to vector<32x128xf32>
    %19 = arith.mulf %18, %17 : vector<32x128xf32>
    %20 = arith.addf %16, %19 : vector<32x128xf32>
    %21 = vector.extract_strided_slice %9 {offsets = [1, 0], sizes = [32, 128], strides = [1, 1]} : vector<34x128xf32> to vector<32x128xf32>
    %22 = vector.broadcast %3 : f32 to vector<32x128xf32>
    %23 = arith.mulf %22, %21 : vector<32x128xf32>
    %24 = arith.addf %20, %23 : vector<32x128xf32>
    %c127_i32_2 = arith.constant 127 : i32
    %25 = tpu.dynamic_rotate %21 by %c127_i32_2 dim 1 : vector<32x128xf32>, i32 -> vector<32x128xf32>
    %26 = vector.broadcast %4 : f32 to vector<32x128xf32>
    %27 = arith.mulf %26, %25 : vector<32x128xf32>
    %28 = arith.addf %24, %27 : vector<32x128xf32>
    %c126_i32_3 = arith.constant 126 : i32
    %29 = tpu.dynamic_rotate %21 by %c126_i32_3 dim 1 : vector<32x128xf32>, i32 -> vector<32x128xf32>
    %30 = vector.broadcast %5 : f32 to vector<32x128xf32>
    %31 = arith.mulf %30, %29 : vector<32x128xf32>
    %32 = arith.addf %28, %31 : vector<32x128xf32>
    %33 = vector.extract_strided_slice %9 {offsets = [2, 0], sizes = [32, 128], strides = [1, 1]} : vector<34x128xf32> to vector<32x128xf32>
    %34 = vector.broadcast %6 : f32 to vector<32x128xf32>
    %35 = arith.mulf %34, %33 : vector<32x128xf32>
    %36 = arith.addf %32, %35 : vector<32x128xf32>
    %c127_i32_4 = arith.constant 127 : i32
    %37 = tpu.dynamic_rotate %33 by %c127_i32_4 dim 1 : vector<32x128xf32>, i32 -> vector<32x128xf32>
    %38 = vector.broadcast %7 : f32 to vector<32x128xf32>
    %39 = arith.mulf %38, %37 : vector<32x128xf32>
    %40 = arith.addf %36, %39 : vector<32x128xf32>
    %c126_i32_5 = arith.constant 126 : i32
    %41 = tpu.dynamic_rotate %33 by %c126_i32_5 dim 1 : vector<32x128xf32>, i32 -> vector<32x128xf32>
    %42 = vector.broadcast %8 : f32 to vector<32x128xf32>
    %43 = arith.mulf %42, %41 : vector<32x128xf32>
    %44 = arith.addf %40, %43 : vector<32x128xf32>
    %cst = arith.constant 0.000000e+00 : f32
    %45 = vector.broadcast %cst : f32 to vector<32x128xf32>
    %46 = arith.maximumf %44, %45 : vector<32x128xf32>
    %c0_6 = arith.constant 0 : index
    %c0_7 = arith.constant 0 : index
    %47 = vector.load %arg2[%c0_6, %c0_7] : memref<32x128xf32, #tpu.memory_space<vmem>>, vector<32x128xf32>
    tpu.vector_store %arg2[%c0_6, %c0_7], %46 {strides = array<i32>} : memref<32x128xf32, #tpu.memory_space<vmem>>, vector<32x128xf32>,
    return
  }
}

</mosaic_0001>

<llo_original>
// kernel: tpu_custom_call.1
$region0: #{tpu_custom_call.1}
  #allocation0 [shape = 'u32[]', space=smem, size = 0x4, offset = 0x4, fixed_abs, tag = 'smem constant byte address 0x4 - core index']
  #allocation1 [shape = 'u32[144,128]{1,0:T(1,128)}', space=vmem, size = 0x12000, scoped, tag = 'internal scratch']
  %s0 = inlined_call_operand.hbm [shape: f32[9], index: 0, kind: input, shape index: {}]
  %s1 = inlined_call_operand.hbm [shape: f32[34,128], index: 1, kind: input, shape index: {}]
  %s2 = inlined_call_operand.hbm [shape: f32[32,128], index: 2, kind: output, shape index: {}]
  %s3 = sld [smem:[#allocation0]]
  $region26: #{tpu_custom_call.1} parent=0
    _
  %s5 = ssub.s32 1, %s3
  %s6 = scalar_select 0, %s5, %s3
  $region1: #{tpu_custom_call.1} parent=0
    #allocation2 [shape = 'u8[512]{0}', space=smem, size = 0x200, scoped, tag = 'input window, operand 0, single buffered']
    #allocation3 [shape = 's32[1]{0}', space=sflag, size = 0x4, scoped, tag = 'scoped memory for tpu_custom_call.1']
    #allocation4 [shape = 's32[1]{0}', space=sflag, size = 0x4, scoped, tag = 'scoped memory for tpu_custom_call.1']
    #allocation5 [shape = 's32[1]{0}', space=sflag, size = 0x4, scoped, tag = 'scoped memory for tpu_custom_call.1']
    #allocation6 [shape = 'u8[20480]{0}', space=vmem, size = 0x5000, scoped, tag = 'input window, operand 1, single buffered']
    #allocation7 [shape = 'u8[16384]{0}', space=vmem, size = 0x4000, scoped, tag = 'output window, operand 0, single buffered']
    %7 = vsyncpa [#allocation5], 0
    %8 = vsyncpa [#allocation3], 0
    %9 = vsyncpa [#allocation4], 0
    // Predicated region
    $region2: #{tpu_custom_call.1} parent=1 // pred_check
      _
    $region3: #{tpu_custom_call.1} parent=1 // pred_check_branch
      %11 = sbr.rel (0) target = $region5
    $region4: #{tpu_custom_call.1} parent=1 // pred_region
      %s13 = ssub.s32 16, 16
      %14 = vsyncadd [#allocation5], %s13
      %17 = dma.hbm_to_smem %s0, 16, [#allocation2], [#allocation5]
    $region5: #{tpu_custom_call.1} parent=1 // pred_fallthru
      _
    // Predicated region
    $region6: #{tpu_custom_call.1} parent=1 // pred_check
      _
    $region7: #{tpu_custom_call.1} parent=1 // pred_check_branch
      %19 = sbr.rel (0) target = $region9
    $region8: #{tpu_custom_call.1} parent=1 // pred_region
      %s21 = ssub.s32 640, 640
      %22 = vsyncadd [#allocation3], %s21
      %s23 = sshll.u32 [#allocation6], 4
      %s24 = int_to_ptr.vmem [resolvable:$true] %s23
      %29 = dma.hbm_to_vmem [thread:$0]  %s1, 640, %s24, [#allocation3], 128, 128, 8
    $region9: #{tpu_custom_call.1} parent=1 // pred_fallthru
      _
    // Predicated region
    $region10: #{tpu_custom_call.1} parent=1 // pred_check
      _
    $region11: #{tpu_custom_call.1} parent=1 // pred_check_branch
      %31 = sbr.rel (0) target = $region13
    $region12: #{tpu_custom_call.1} parent=1 // pred_region
      %32 = dma.done [#allocation5], 16
    $region13: #{tpu_custom_call.1} parent=1 // pred_fallthru
      _
    // Predicated region
    $region14: #{tpu_custom_call.1} parent=1 // pred_check
      _
    $region15: #{tpu_custom_call.1} parent=1 // pred_check_branch
      %34 = sbr.rel (0) target = $region17
    $region16: #{tpu_custom_call.1} parent=1 // pred_region
      %35 = dma.done [#allocation3], 640
    $region17: #{tpu_custom_call.1} parent=1 // pred_fallthru
      _
    %36 = sfence
    %s37 = sld [smem:[#allocation2]]
    %s38 = sld [smem:[#allocation2 + $0x1]]
    %s39 = sld [smem:[#allocation2 + $0x2]]
    %s40 = sld [smem:[#allocation2 + $0x3]]
    %s41 = sld [smem:[#allocation2 + $0x4]]
    %s42 = sld [smem:[#allocation2 + $0x5]]
    %s43 = sld [smem:[#allocation2 + $0x6]]
    %s44 = sld [smem:[#allocation2 + $0x7]]
    %s45 = sld [smem:[#allocation2 + $0x8]]
    %v46 = vld [vmem:[#allocation6] sm:$0xff]
    %v47 = vld [vmem:[#allocation6 + $0x8] sm:$0xff]
    %v48 = vld [vmem:[#allocation6 + $0x10] sm:$0xff]
    %v49 = vld [vmem:[#allocation6 + $0x18] sm:$0xff]
    %v50 = vld [vmem:[#allocation6 + $0x20] sm:$0x3]
    %v51 = vstv %s37
    %v52 = vmul.f32 %v51, %v46
    %v53 = vmul.f32 %v51, %v47
    %v54 = vmul.f32 %v51, %v48
    %v55 = vmul.f32 %v51, %v49
    %56 = vrot.lane.b32.xlu0 %v46, 127
    %v57 = vpop.permute.xlu0 %56
    %58 = vrot.lane.b32.xlu0 %v47, 127
    %v59 = vpop.permute.xlu0 %58
    %60 = vrot.lane.b32.xlu0 %v48, 127
    %v61 = vpop.permute.xlu0 %60
    %62 = vrot.lane.b32.xlu0 %v49, 127
    %v63 = vpop.permute.xlu0 %62
    %v64 = vstv %s38
    %v65 = vmul.f32 %v64, %v57
    %v66 = vmul.f32 %v64, %v59
    %v67 = vmul.f32 %v64, %v61
    %v68 = vmul.f32 %v64, %v63
    %v69 = vadd.f32 %v52, %v65
    %v70 = vadd.f32 %v53, %v66
    %v71 = vadd.f32 %v54, %v67
    %v72 = vadd.f32 %v55, %v68
    %73 = vrot.lane.b32.xlu0 %v46, 126
    %v74 = vpop.permute.xlu0 %73
    %75 = vrot.lane.b32.xlu0 %v47, 126
    %v76 = vpop.permute.xlu0 %75
    %77 = vrot.lane.b32.xlu0 %v48, 126
    %v78 = vpop.permute.xlu0 %77
    %79 = vrot.lane.b32.xlu0 %v49, 126
    %v80 = vpop.permute.xlu0 %79
    %v81 = vstv %s39
    %v82 = vmul.f32 %v81, %v74
    %v83 = vmul.f32 %v81, %v76
    %v84 = vmul.f32 %v81, %v78
    %v85 = vmul.f32 %v81, %v80
    %v86 = vadd.f32 %v69, %v82
    %v87 = vadd.f32 %v70, %v83
    %v88 = vadd.f32 %v71, %v84
    %v89 = vadd.f32 %v72, %v85
    %v90 = vstv %s40
    %v91 = vmul.f32 %v90, %v46
    %v92 = vmul.f32 %v90, %v47
    %v93 = vmul.f32 %v90, %v48
    %v94 = vmul.f32 %v90, %v49
    %v95 = vmul.f32 %v90, %v50
    %vm101 = vcmask 1046528
    %v102 = vrot.slane %v91, 1
    %v103 = vrot.slane %v92, 1
    %v104 = vsel %vm101, %v102, %v103
    %v105 = vrot.slane %v93, 1
    %v106 = vsel %vm101, %v103, %v105
    %v107 = vrot.slane %v94, 1
    %v108 = vsel %vm101, %v105, %v107
    %v109 = vrot.slane %v95, 1
    %v110 = vsel %vm101, %v107, %v109
    %v115 = vadd.f32 %v86, %v104
    %v116 = vadd.f32 %v87, %v106
    %v117 = vadd.f32 %v88, %v108
    %v118 = vadd.f32 %v89, %v110
    %v124 = vrot.slane %v46, 1
    %v125 = vrot.slane %v47, 1
    %v126 = vsel %vm101, %v124, %v125
    %v127 = vrot.slane %v48, 1
    %v128 = vsel %vm101, %v125, %v127
    %v129 = vrot.slane %v49, 1
    %v130 = vsel %vm101, %v127, %v129
    %v131 = vrot.slane %v50, 1
    %v132 = vsel %vm101, %v129, %v131
    %137 = vrot.lane.b32.xlu0 %v126, 127
    %v138 = vpop.permute.xlu0 %137
    %139 = vrot.lane.b32.xlu0 %v128, 127
    %v140 = vpop.permute.xlu0 %139
    %141 = vrot.lane.b32.xlu0 %v130, 127
    %v142 = vpop.permute.xlu0 %141
    %143 = vrot.lane.b32.xlu0 %v132, 127
    %v144 = vpop.permute.xlu0 %143
    %v145 = vstv %s41
    %v146 = vmul.f32 %v145, %v138
    %v147 = vmul.f32 %v145, %v140
    %v148 = vmul.f32 %v145, %v142
    %v149 = vmul.f32 %v145, %v144
    %v150 = vadd.f32 %v115, %v146
    %v151 = vadd.f32 %v116, %v147
    %v152 = vadd.f32 %v117, %v148
    %v153 = vadd.f32 %v118, %v149
    %154 = vrot.lane.b32.xlu0 %v126, 126
    %v155 = vpop.permute.xlu0 %154
    %156 = vrot.lane.b32.xlu0 %v128, 126
    %v157 = vpop.permute.xlu0 %156
    %158 = vrot.lane.b32.xlu0 %v130, 126
    %v159 = vpop.permute.xlu0 %158
    %160 = vrot.lane.b32.xlu0 %v132, 126
    %v161 = vpop.permute.xlu0 %160
    %v162 = vstv %s42
    %v163 = vmul.f32 %v162, %v155
    %v164 = vmul.f32 %v162, %v157
    %v165 = vmul.f32 %v162, %v159
    %v166 = vmul.f32 %v162, %v161
    %v167 = vadd.f32 %v150, %v163
    %v168 = vadd.f32 %v151, %v164
    %v169 = vadd.f32 %v152, %v165
    %v170 = vadd.f32 %v153, %v166
    %v171 = vstv %s43
    %v172 = vmul.f32 %v171, %v46
    %v173 = vmul.f32 %v171, %v47
    %v174 = vmul.f32 %v171, %v48
    %v175 = vmul.f32 %v171, %v49
    %v176 = vmul.f32 %v171, %v50
    %vm182 = vcmask 1045504
    %v183 = vrot.slane %v172, 2
    %v184 = vrot.slane %v173, 2
    %v185 = vsel %vm182, %v183, %v184
    %v186 = vrot.slane %v174, 2
    %v187 = vsel %vm182, %v184, %v186
    %v188 = vrot.slane %v175, 2
    %v189 = vsel %vm182, %v186, %v188
    %v190 = vrot.slane %v176, 2
    %v191 = vsel %vm182, %v188, %v190
    %v196 = vadd.f32 %v167, %v185
    %v197 = vadd.f32 %v168, %v187
    %v198 = vadd.f32 %v169, %v189
    %v199 = vadd.f32 %v170, %v191
    %v200 = vrot.slane %v46, 2
    %v201 = vrot.slane %v47, 2
    %v202 = vsel %vm182, %v200, %v201
    %v203 = vrot.slane %v48, 2
    %v204 = vsel %vm182, %v201, %v203
    %v205 = vrot.slane %v49, 2
    %v206 = vsel %vm182, %v203, %v205
    %v207 = vrot.slane %v50, 2
    %v208 = vsel %vm182, %v205, %v207
    %213 = vrot.lane.b32.xlu0 %v202, 127
    %v214 = vpop.permute.xlu0 %213
    %215 = vrot.lane.b32.xlu0 %v204, 127
    %v216 = vpop.permute.xlu0 %215
    %217 = vrot.lane.b32.xlu0 %v206, 127
    %v218 = vpop.permute.xlu0 %217
    %219 = vrot.lane.b32.xlu0 %v208, 127
    %v220 = vpop.permute.xlu0 %219
    %v221 = vstv %s44
    %v222 = vmul.f32 %v221, %v214
    %v223 = vmul.f32 %v221, %v216
    %v224 = vmul.f32 %v221, %v218
    %v225 = vmul.f32 %v221, %v220
    %v226 = vadd.f32 %v196, %v222
    %v227 = vadd.f32 %v197, %v223
    %v228 = vadd.f32 %v198, %v224
    %v229 = vadd.f32 %v199, %v225
    %230 = vrot.lane.b32.xlu0 %v202, 126
    %v231 = vpop.permute.xlu0 %230
    %232 = vrot.lane.b32.xlu0 %v204, 126
    %v233 = vpop.permute.xlu0 %232
    %234 = vrot.lane.b32.xlu0 %v206, 126
    %v235 = vpop.permute.xlu0 %234
    %236 = vrot.lane.b32.xlu0 %v208, 126
    %v237 = vpop.permute.xlu0 %236
    %v238 = vstv %s45
    %v239 = vmul.f32 %v238, %v231
    %v240 = vmul.f32 %v238, %v233
    %v241 = vmul.f32 %v238, %v235
    %v242 = vmul.f32 %v238, %v237
    %v243 = vadd.f32 %v226, %v239
    %v244 = vadd.f32 %v227, %v240
    %v245 = vadd.f32 %v228, %v241
    %v246 = vadd.f32 %v229, %v242
    %v247 = vmax.f32 %v243, 0.0
    %v248 = vmax.f32 %v244, 0.0
    %v249 = vmax.f32 %v245, 0.0
    %v250 = vmax.f32 %v246, 0.0
    %251 = vst [vmem:[#allocation7] sm:$0xff] %v247
    %252 = vst [vmem:[#allocation7 + $0x8] sm:$0xff] %v248
    %253 = vst [vmem:[#allocation7 + $0x10] sm:$0xff] %v249
    %254 = vst [vmem:[#allocation7 + $0x18] sm:$0xff] %v250
    // Predicated region
    $region18: #{tpu_custom_call.1} parent=1 // pred_check
      _
    $region19: #{tpu_custom_call.1} parent=1 // pred_check_branch
      %256 = sbr.rel (0) target = $region21
    $region20: #{tpu_custom_call.1} parent=1 // pred_region
      %s258 = ssub.s32 512, 512
      %259 = vsyncadd [#allocation4], %s258
      %s260 = sshll.u32 [#allocation7], 4
      %s261 = int_to_ptr.vmem [resolvable:$true] %s260
      %266 = dma.vmem_to_hbm [thread:$0]  %s261, 512, %s2, [#allocation4], 128, 128, 8
    $region21: #{tpu_custom_call.1} parent=1 // pred_fallthru
      _
    // Predicated region
    $region22: #{tpu_custom_call.1} parent=1 // pred_check
      _
    $region23: #{tpu_custom_call.1} parent=1 // pred_check_branch
      %268 = sbr.rel (0) target = $region25
    $region24: #{tpu_custom_call.1} parent=1 // pred_region
      %269 = dma.done [#allocation4], 512
    $region25: #{tpu_custom_call.1} parent=1 // pred_fallthru
      _
    %270 = vsyncpa [#allocation3], 1
    %271 = vsyncpa [#allocation4], 1
    %272 = vsyncpa [#allocation5], 1

</llo_original>
